<compile_context>
chip_gen: v7x
topology: tpu7x:2x2x1
jax: 0.10.0
libtpu: 0.0.40
codegen_flags: <defaults>
</compile_context>

<pallas_src>
import functools

import numpy as np
import jax
import jax.numpy as jnp
from jax import lax
from jax.experimental import pallas as pl
from jax.experimental.pallas import tpu as pltpu

_INV_TWO_PI = np.float32(1.0 / (2.0 * np.pi))


def _gmm_loss_kernel(pi_ref, mu1_ref, mu2_ref, s1_ref, s2_ref, corr_ref,
                     pen_logits_ref, x1_ref, x2_ref, pen_ref,
                     out_ref, *, n_total, tile_n, eps, train_mode):
    i = pl.program_id(0)

    @pl.when(i == 0)
    def _():
        out_ref[...] = jnp.zeros_like(out_ref)

    # Validity mask for the (possibly padded) last tile: (1, TN) bool.
    col = lax.broadcasted_iota(jnp.int32, (1, tile_n), 1)
    valid = (i * tile_n + col) < n_total

    # ----- bivariate Gaussian density per mixture component ------------------
    x1 = x1_ref[...]            # (1, TN)
    x2 = x2_ref[...]            # (1, TN)
    mu1 = mu1_ref[...]          # (M, TN)
    mu2 = mu2_ref[...]
    s1 = s1_ref[...]
    s2 = s2_ref[...]
    rho = corr_ref[...]
    pi = pi_ref[...]

    inv_s1 = pl.reciprocal(s1, approx=True)      # EUP
    inv_s2 = pl.reciprocal(s2, approx=True)      # EUP
    n1s = (x1 - mu1) * inv_s1                    # norm1 / s1
    n2s = (x2 - mu2) * inv_s2                    # norm2 / s2
    neg_rho = 1.0 - rho * rho
    r = lax.rsqrt(neg_rho)                       # 1 / sqrt(1 - rho^2)  (EUP)
    z = n1s * n1s + n2s * n2s - 2.0 * rho * (n1s * n2s)
    # density = exp(-z / (2*neg_rho)) / (2*pi*s1*s2*sqrt(neg_rho))
    density = jnp.exp(-0.5 * z * (r * r)) * (inv_s1 * inv_s2 * r) * _INV_TWO_PI

    gmm = jnp.sum(density * pi, axis=0, keepdims=True)   # (1, TN) sublane reduce
    result1 = -jnp.log(gmm + eps)                        # (1, TN)

    pen = pen_ref[...]                                   # (3, TN)
    masks = 1.0 - pen[2:3, :]                            # (1, TN)

    # ----- cross entropy on pen logits (probability targets) -----------------
    logits = pen_logits_ref[...]                         # (3, TN)
    m = jnp.max(logits, axis=0, keepdims=True)
    shifted = logits - m
    lse = jnp.log(jnp.sum(jnp.exp(shifted), axis=0, keepdims=True))
    ce = -jnp.sum(pen * (shifted - lse), axis=0, keepdims=True)   # (1, TN)

    if train_mode:
        contrib = result1 * masks + ce
    else:
        contrib = (result1 + ce) * masks

    # Lane-wide partial-sum accumulation; padded columns contribute zero.
    out_ref[...] += jnp.where(valid, contrib, 0.0)


def _round_up(x, m):
    return ((x + m - 1) // m) * m


def gaussian_mixture_reconstruction_loss(pi, mu1, mu2, s1, s2, corr,
                                         pen_logits, x1_data, x2_data,
                                         pen_data, mode, *, bs, eps=1e-6,
                                         tile_n=1024):
    """Inputs in the module's natural layout: [N, M] mixtures, [N, 1] targets,
    [N, 3] pen logits/targets.  The wrapper re-lays them out lane-dense."""
    N, M = pi.shape
    assert tile_n % 128 == 0, "tile_n must be a multiple of 128"
    tile = min(tile_n, _round_up(N, 128))
    grid = (pl.cdiv(N, tile),)

    # Lane-dense layout: N on the lane axis.
    t = jnp.transpose
    piT, mu1T, mu2T = t(pi), t(mu1), t(mu2)
    s1T, s2T, corrT = t(s1), t(s2), t(corr)
    logitsT = t(pen_logits)                       # (3, N)
    penT = t(pen_data)                            # (3, N)
    x1T = jnp.reshape(x1_data, (1, N))            # (1, N)
    x2T = jnp.reshape(x2_data, (1, N))

    nm_spec = pl.BlockSpec((M, tile), lambda i: (0, i))
    n1_spec = pl.BlockSpec((1, tile), lambda i: (0, i))
    n3_spec = pl.BlockSpec((3, tile), lambda i: (0, i))

    kernel = functools.partial(
        _gmm_loss_kernel, n_total=N, tile_n=tile, eps=float(eps),
        train_mode=(mode == 'train'))

    partial = pl.pallas_call(
        kernel,
        out_shape=jax.ShapeDtypeStruct((1, tile), jnp.float32),
        grid_spec=pltpu.PrefetchScalarGridSpec(
            num_scalar_prefetch=0,
            grid=grid,
            in_specs=[nm_spec, nm_spec, nm_spec, nm_spec, nm_spec, nm_spec,
                      n3_spec, n1_spec, n1_spec, n3_spec],
            out_specs=pl.BlockSpec((1, tile), lambda i: (0, 0)),
        ),
        compiler_params=pltpu.CompilerParams(
            dimension_semantics=("arbitrary",)),
    )(piT, mu1T, mu2T, s1T, s2T, corrT, logitsT, x1T, x2T, penT)

    # Final cross-lane reduce + normalization (tiny, done once in XLA).
    return jnp.sum(partial) / jnp.float32(bs)


def _reference(pi, mu1, mu2, s1, s2, corr, pen_logits, x1, x2, pen, mode,
               bs, eps=1e-6):
    norm1 = x1 - mu1
    norm2 = x2 - mu2
    s1s2 = s1 * s2
    z = ((norm1 / s1) ** 2 + (norm2 / s2) ** 2
         - 2.0 * corr * norm1 * norm2 / s1s2)
    neg_rho = 1.0 - corr ** 2
    dens = jnp.exp(-z / (2.0 * neg_rho)) / (2 * np.pi * s1s2 * jnp.sqrt(neg_rho))
    r1 = -jnp.log(jnp.sum(dens * pi, axis=1) + eps)
    masks = 1.0 - pen[:, 2]
    r1 = jnp.sum(r1 * masks)
    logp = jax.nn.log_softmax(pen_logits, axis=1)
    ce = -jnp.sum(pen * logp, axis=1)
    r2 = jnp.sum(ce) if mode == 'train' else jnp.sum(ce * masks)
    return (r1 + r2) / bs


def _make_inputs(key, N, M):
    ks = jax.random.split(key, 10)
    logits_pi = jax.random.normal(ks[0], (N, M), jnp.float32)
    pi = jax.nn.softmax(logits_pi, axis=1)
    mu1 = jax.random.normal(ks[1], (N, M), jnp.float32)
    mu2 = jax.random.normal(ks[2], (N, M), jnp.float32)
    s1 = jnp.exp(0.3 * jax.random.normal(ks[3], (N, M), jnp.float32))
    s2 = jnp.exp(0.3 * jax.random.normal(ks[4], (N, M), jnp.float32))
    corr = jnp.tanh(0.5 * jax.random.normal(ks[5], (N, M), jnp.float32))
    pen_logits = jax.random.normal(ks[6], (N, 3), jnp.float32)
    x1_data = jax.random.normal(ks[7], (N, 1), jnp.float32)
    x2_data = jax.random.normal(ks[8], (N, 1), jnp.float32)
    pen_idx = jax.random.randint(ks[9], (N,), 0, 3)
    pen_data = jax.nn.one_hot(pen_idx, 3, dtype=jnp.float32)
    return pi, mu1, mu2, s1, s2, corr, pen_logits, x1_data, x2_data, pen_data


if __name__ == "__main__":
    key = jax.random.PRNGKey(0)
    M = 20
    bs = 2

    # (N, expected-to-exercise): 128 = exact tile, 100 = padded/masked tile.
    for N in (2 * 64, 2 * 50):
        inputs = _make_inputs(jax.random.fold_in(key, N), N, M)
        for mode in ("train", "eval"):
            out = gaussian_mixture_reconstruction_loss(*inputs, mode, bs=bs)
            out = jax.block_until_ready(out)
            ref = _reference(*inputs, mode, bs)
            # Slightly loose tolerance: the kernel uses approximate EUP
            # reciprocals (pl.reciprocal(..., approx=True)) per the perf review.
            np.testing.assert_allclose(np.asarray(out), np.asarray(ref),
                                       rtol=2e-3, atol=2e-3)

    print("KERNEL_OK")
</pallas_src>

<mosaic_0001>
module attributes {stable_mosaic.version = 11 : i64} {
  func.func @_gmm_loss_kernel(%arg0: i32, %arg1: memref<20x128xf32, #tpu.memory_space<vmem>>, %arg2: memref<20x128xf32, #tpu.memory_space<vmem>>, %arg3: memref<20x128xf32, #tpu.memory_space<vmem>>, %arg4: memref<20x128xf32, #tpu.memory_space<vmem>>, %arg5: memref<20x128xf32, #tpu.memory_space<vmem>>, %arg6: memref<20x128xf32, #tpu.memory_space<vmem>>, %arg7: memref<3x128xf32, #tpu.memory_space<vmem>>, %arg8: memref<1x128xf32, #tpu.memory_space<vmem>>, %arg9: memref<1x128xf32, #tpu.memory_space<vmem>>, %arg10: memref<3x128xf32, #tpu.memory_space<vmem>>, %arg11: memref<1x128xf32, #tpu.memory_space<vmem>>) attributes {dimension_semantics = [#tpu.dimension_semantics<arbitrary>], iteration_bounds = array<i64: 1>, scalar_prefetch = 0 : i64, scratch_operands = 0 : i64, tpu.core_type = #tpu.core_type<tc>, window_params = [{transform_indices = @transform_0, window_bounds = array<i64: 20, 128>}, {transform_indices = @transform_1, window_bounds = array<i64: 20, 128>}, {transform_indices = @transform_2, window_bounds = array<i64: 20, 128>}, {transform_indices = @transform_3, window_bounds = array<i64: 20, 128>}, {transform_indices = @transform_4, window_bounds = array<i64: 20, 128>}, {transform_indices = @transform_5, window_bounds = array<i64: 20, 128>}, {transform_indices = @transform_6, window_bounds = array<i64: 3, 128>}, {transform_indices = @transform_7, window_bounds = array<i64: 1, 128>}, {transform_indices = @transform_8, window_bounds = array<i64: 1, 128>}, {transform_indices = @transform_9, window_bounds = array<i64: 3, 128>}, {pipeline_mode = #tpu.pipeline_mode<synchronous>, transform_indices = @transform_10, window_bounds = array<i64: 1, 128>}]} {
    %c0_i32 = arith.constant 0 : i32
    %0 = arith.cmpi eq, %arg0, %c0_i32 : i32
    %1 = arith.extui %0 : i1 to i32
    %c0_i32_0 = arith.constant 0 : i32
    %2 = arith.cmpi ne, %1, %c0_i32_0 : i32
    scf.if %2 {
      %cst_37 = arith.constant 0.000000e+00 : f32
      %82 = vector.broadcast %cst_37 : f32 to vector<1x128xf32>
      %c0_38 = arith.constant 0 : index
      %c0_39 = arith.constant 0 : index
      %83 = vector.load %arg11[%c0_38, %c0_39] : memref<1x128xf32, #tpu.memory_space<vmem>>, vector<1x128xf32>
      tpu.vector_store %arg11[%c0_38, %c0_39], %82 {strides = array<i32>} : memref<1x128xf32, #tpu.memory_space<vmem>>, vector<1x128xf32>,
    } else {
    }
    %3 = tpu.iota {dimensions = array<i32: 1>} : vector<1x128xi32>
    %c128_i32 = arith.constant 128 : i32
    %4 = arith.muli %arg0, %c128_i32 : i32
    %5 = vector.broadcast %4 : i32 to vector<1x128xi32>
    %6 = arith.addi %5, %3 : vector<1x128xi32>
    %c128_i32_1 = arith.constant 128 : i32
    %7 = vector.broadcast %c128_i32_1 : i32 to vector<1x128xi32>
    %8 = arith.cmpi slt, %6, %7 : vector<1x128xi32>
    %c0 = arith.constant 0 : index
    %c0_2 = arith.constant 0 : index
    %9 = vector.load %arg8[%c0, %c0_2] : memref<1x128xf32, #tpu.memory_space<vmem>>, vector<1x128xf32>
    %c0_3 = arith.constant 0 : index
    %c0_4 = arith.constant 0 : index
    %10 = vector.load %arg9[%c0_3, %c0_4] : memref<1x128xf32, #tpu.memory_space<vmem>>, vector<1x128xf32>
    %c0_5 = arith.constant 0 : index
    %c0_6 = arith.constant 0 : index
    %11 = vector.load %arg2[%c0_5, %c0_6] : memref<20x128xf32, #tpu.memory_space<vmem>>, vector<20x128xf32>
    %c0_7 = arith.constant 0 : index
    %c0_8 = arith.constant 0 : index
    %12 = vector.load %arg3[%c0_7, %c0_8] : memref<20x128xf32, #tpu.memory_space<vmem>>, vector<20x128xf32>
    %c0_9 = arith.constant 0 : index
    %c0_10 = arith.constant 0 : index
    %13 = vector.load %arg4[%c0_9, %c0_10] : memref<20x128xf32, #tpu.memory_space<vmem>>, vector<20x128xf32>
    %c0_11 = arith.constant 0 : index
    %c0_12 = arith.constant 0 : index
    %14 = vector.load %arg5[%c0_11, %c0_12] : memref<20x128xf32, #tpu.memory_space<vmem>>, vector<20x128xf32>
    %c0_13 = arith.constant 0 : index
    %c0_14 = arith.constant 0 : index
    %15 = vector.load %arg6[%c0_13, %c0_14] : memref<20x128xf32, #tpu.memory_space<vmem>>, vector<20x128xf32>
    %c0_15 = arith.constant 0 : index
    %c0_16 = arith.constant 0 : index
    %16 = vector.load %arg1[%c0_15, %c0_16] : memref<20x128xf32, #tpu.memory_space<vmem>>, vector<20x128xf32>
    %17 = tpu.reciprocal %13 {approx = true} : vector<20x128xf32> -> vector<20x128xf32>
    %18 = tpu.reciprocal %14 {approx = true} : vector<20x128xf32> -> vector<20x128xf32>
    %19 = vector.broadcast %9 : vector<1x128xf32> to vector<20x128xf32>
    %20 = arith.subf %19, %11 : vector<20x128xf32>
    %21 = arith.mulf %20, %17 : vector<20x128xf32>
    %22 = vector.broadcast %10 : vector<1x128xf32> to vector<20x128xf32>
    %23 = arith.subf %22, %12 : vector<20x128xf32>
    %24 = arith.mulf %23, %18 : vector<20x128xf32>
    %25 = arith.mulf %15, %15 : vector<20x128xf32>
    %cst = arith.constant 1.000000e+00 : f32
    %26 = vector.broadcast %cst : f32 to vector<20x128xf32>
    %27 = arith.subf %26, %25 : vector<20x128xf32>
    %28 = math.rsqrt %27 : vector<20x128xf32>
    %29 = arith.mulf %21, %21 : vector<20x128xf32>
    %30 = arith.mulf %24, %24 : vector<20x128xf32>
    %31 = arith.addf %29, %30 : vector<20x128xf32>
    %cst_17 = arith.constant 2.000000e+00 : f32
    %32 = vector.broadcast %cst_17 : f32 to vector<20x128xf32>
    %33 = arith.mulf %32, %15 : vector<20x128xf32>
    %34 = arith.mulf %21, %24 : vector<20x128xf32>
    %35 = arith.mulf %33, %34 : vector<20x128xf32>
    %36 = arith.subf %31, %35 : vector<20x128xf32>
    %cst_18 = arith.constant -5.000000e-01 : f32
    %37 = vector.broadcast %cst_18 : f32 to vector<20x128xf32>
    %38 = arith.mulf %37, %36 : vector<20x128xf32>
    %39 = arith.mulf %28, %28 : vector<20x128xf32>
    %40 = arith.mulf %38, %39 : vector<20x128xf32>
    %41 = math.exp %40 : vector<20x128xf32>
    %42 = arith.mulf %17, %18 : vector<20x128xf32>
    %43 = arith.mulf %42, %28 : vector<20x128xf32>
    %44 = arith.mulf %41, %43 : vector<20x128xf32>
    %cst_19 = arith.constant 0.159154937 : f32
    %45 = vector.broadcast %cst_19 : f32 to vector<20x128xf32>
    %46 = arith.mulf %44, %45 : vector<20x128xf32>
    %47 = arith.mulf %46, %16 : vector<20x128xf32>
    %cst_20 = arith.constant dense<0.000000e+00> : vector<128xf32>
    %48 = vector.multi_reduction <add>, %47, %cst_20 [0] : vector<20x128xf32> to vector<128xf32>
    %49 = vector.shape_cast %48 : vector<128xf32> to vector<1x128xf32>
    %cst_21 = arith.constant 9.99999997E-7 : f32
    %50 = vector.broadcast %cst_21 : f32 to vector<1x128xf32>
    %51 = arith.addf %49, %50 : vector<1x128xf32>
    %52 = math.log %51 : vector<1x128xf32>
    %cst_22 = arith.constant 0.000000e+00 : f32
    %53 = vector.broadcast %cst_22 : f32 to vector<1x128xf32>
    %54 = arith.subf %53, %52 : vector<1x128xf32>
    %c0_23 = arith.constant 0 : index
    %c0_24 = arith.constant 0 : index
    %55 = vector.load %arg10[%c0_23, %c0_24] : memref<3x128xf32, #tpu.memory_space<vmem>>, vector<3x128xf32>
    %56 = vector.extract_strided_slice %55 {offsets = [2, 0], sizes = [1, 128], strides = [1, 1]} : vector<3x128xf32> to vector<1x128xf32>
    %cst_25 = arith.constant 1.000000e+00 : f32
    %57 = vector.broadcast %cst_25 : f32 to vector<1x128xf32>
    %58 = arith.subf %57, %56 : vector<1x128xf32>
    %c0_26 = arith.constant 0 : index
    %c0_27 = arith.constant 0 : index
    %59 = vector.load %arg7[%c0_26, %c0_27] : memref<3x128xf32, #tpu.memory_space<vmem>>, vector<3x128xf32>
    %cst_28 = arith.constant dense<0xFF800000> : vector<128xf32>
    %60 = vector.multi_reduction <maximumf>, %59, %cst_28 [0] : vector<3x128xf32> to vector<128xf32>
    %61 = vector.shape_cast %60 : vector<128xf32> to vector<1x128xf32>
    %62 = vector.broadcast %61 : vector<1x128xf32> to vector<3x128xf32>
    %63 = arith.subf %59, %62 : vector<3x128xf32>
    %64 = math.exp %63 : vector<3x128xf32>
    %cst_29 = arith.constant dense<0.000000e+00> : vector<128xf32>
    %65 = vector.multi_reduction <add>, %64, %cst_29 [0] : vector<3x128xf32> to vector<128xf32>
    %66 = vector.shape_cast %65 : vector<128xf32> to vector<1x128xf32>
    %67 = math.log %66 : vector<1x128xf32>
    %68 = vector.broadcast %67 : vector<1x128xf32> to vector<3x128xf32>
    %69 = arith.subf %63, %68 : vector<3x128xf32>
    %70 = arith.mulf %55, %69 : vector<3x128xf32>
    %cst_30 = arith.constant dense<0.000000e+00> : vector<128xf32>
    %71 = vector.multi_reduction <add>, %70, %cst_30 [0] : vector<3x128xf32> to vector<128xf32>
    %72 = vector.shape_cast %71 : vector<128xf32> to vector<1x128xf32>
    %cst_31 = arith.constant 0.000000e+00 : f32
    %73 = vector.broadcast %cst_31 : f32 to vector<1x128xf32>
    %74 = arith.subf %73, %72 : vector<1x128xf32>
    %75 = arith.mulf %54, %58 : vector<1x128xf32>
    %76 = arith.addf %75, %74 : vector<1x128xf32>
    %c0_32 = arith.constant 0 : index
    %c0_33 = arith.constant 0 : index
    %77 = vector.load %arg11[%c0_32, %c0_33] : memref<1x128xf32, #tpu.memory_space<vmem>>, vector<1x128xf32>
    %cst_34 = arith.constant 0.000000e+00 : f32
    %78 = vector.broadcast %cst_34 : f32 to vector<1x128xf32>
    %79 = arith.select %8, %76, %78 : vector<1x128xi1>, vector<1x128xf32>
    %80 = arith.addf %77, %79 : vector<1x128xf32>
    %c0_35 = arith.constant 0 : index
    %c0_36 = arith.constant 0 : index
    %81 = vector.load %arg11[%c0_35, %c0_36] : memref<1x128xf32, #tpu.memory_space<vmem>>, vector<1x128xf32>
    tpu.vector_store %arg11[%c0_35, %c0_36], %80 {strides = array<i32>} : memref<1x128xf32, #tpu.memory_space<vmem>>, vector<1x128xf32>,
    return
  }
  func.func @transform_0(%arg0: i32) -> (i32, i32) {
    %c0_i32 = arith.constant 0 : i32
    %c0_i32_0 = arith.constant 0 : i32
    return %c0_i32, %arg0 : i32, i32
  }
  func.func @transform_1(%arg0: i32) -> (i32, i32) {
    %c0_i32 = arith.constant 0 : i32
    %c0_i32_0 = arith.constant 0 : i32
    return %c0_i32, %arg0 : i32, i32
  }
  func.func @transform_2(%arg0: i32) -> (i32, i32) {
    %c0_i32 = arith.constant 0 : i32
    %c0_i32_0 = arith.constant 0 : i32
    return %c0_i32, %arg0 : i32, i32
  }
  func.func @transform_3(%arg0: i32) -> (i32, i32) {
    %c0_i32 = arith.constant 0 : i32
    %c0_i32_0 = arith.constant 0 : i32
    return %c0_i32, %arg0 : i32, i32
  }
  func.func @transform_4(%arg0: i32) -> (i32, i32) {
    %c0_i32 = arith.constant 0 : i32
    %c0_i32_0 = arith.constant 0 : i32
    return %c0_i32, %arg0 : i32, i32
  }
  func.func @transform_5(%arg0: i32) -> (i32, i32) {
    %c0_i32 = arith.constant 0 : i32
    %c0_i32_0 = arith.constant 0 : i32
    return %c0_i32, %arg0 : i32, i32
  }
  func.func @transform_6(%arg0: i32) -> (i32, i32) {
    %c0_i32 = arith.constant 0 : i32
    %c0_i32_0 = arith.constant 0 : i32
    return %c0_i32, %arg0 : i32, i32
  }
  func.func @transform_7(%arg0: i32) -> (i32, i32) {
    %c0_i32 = arith.constant 0 : i32
    %c0_i32_0 = arith.constant 0 : i32
    return %c0_i32, %arg0 : i32, i32
  }
  func.func @transform_8(%arg0: i32) -> (i32, i32) {
    %c0_i32 = arith.constant 0 : i32
    %c0_i32_0 = arith.constant 0 : i32
    return %c0_i32, %arg0 : i32, i32
  }
  func.func @transform_9(%arg0: i32) -> (i32, i32) {
    %c0_i32 = arith.constant 0 : i32
    %c0_i32_0 = arith.constant 0 : i32
    return %c0_i32, %arg0 : i32, i32
  }
  func.func @transform_10(%arg0: i32) -> (i32, i32) {
    %c0_i32 = arith.constant 0 : i32
    %c0_i32_0 = arith.constant 0 : i32
    %c0_i32_1 = arith.constant 0 : i32
    return %c0_i32, %c0_i32_0 : i32, i32
  }
}

</mosaic_0001>

<llo_original>
// kernel: tpu_custom_call.1
$region0: #{tpu_custom_call.1}
  #allocation0 [shape = 'u32[]', space=smem, size = 0x4, offset = 0x4, fixed_abs, tag = 'smem constant byte address 0x4 - core index']
  #allocation1 [shape = 'u32[144,128]{1,0:T(1,128)}', space=vmem, size = 0x12000, scoped, tag = 'internal scratch']
  %s0 = inlined_call_operand.hbm [shape: f32[20,128], index: 0, kind: input, shape index: {}]
  %s1 = inlined_call_operand.hbm [shape: f32[20,128], index: 1, kind: input, shape index: {}]
  %s2 = inlined_call_operand.hbm [shape: f32[20,128], index: 2, kind: input, shape index: {}]
  %s3 = inlined_call_operand.hbm [shape: f32[20,128], index: 3, kind: input, shape index: {}]
  %s4 = inlined_call_operand.hbm [shape: f32[20,128], index: 4, kind: input, shape index: {}]
  %s5 = inlined_call_operand.hbm [shape: f32[20,128], index: 5, kind: input, shape index: {}]
  %s6 = inlined_call_operand.vmem [shape: f32[3,128], index: 6, kind: input, shape index: {}]
  %s7 = inlined_call_operand.vmem [shape: f32[1,128], index: 7, kind: input, shape index: {}]
  %s8 = inlined_call_operand.vmem [shape: f32[1,128], index: 8, kind: input, shape index: {}]
  %s9 = inlined_call_operand.vmem [shape: f32[3,128], index: 9, kind: input, shape index: {}]
  %s10 = inlined_call_operand.hbm [shape: f32[1,128], index: 10, kind: output, shape index: {}]
  %s11 = sld [smem:[#allocation0]]
  $region78: #{tpu_custom_call.1} parent=0
    _
  %s13 = ssub.s32 1, %s11
  %s14 = scalar_select 0, %s13, %s11
  $region1: #{tpu_custom_call.1} parent=0
    #allocation2 [shape = 'u8[12288]{0}', space=vmem, size = 0x3000, scoped, tag = 'input window, operand 0, single buffered']
    #allocation3 [shape = 's32[1]{0}', space=sflag, size = 0x4, scoped, tag = 'scoped memory for tpu_custom_call.1']
    #allocation4 [shape = 's32[1]{0}', space=sflag, size = 0x4, scoped, tag = 'scoped memory for tpu_custom_call.1']
    #allocation5 [shape = 'u8[12288]{0}', space=vmem, size = 0x3000, scoped, tag = 'input window, operand 1, single buffered']
    #allocation6 [shape = 's32[1]{0}', space=sflag, size = 0x4, scoped, tag = 'scoped memory for tpu_custom_call.1']
    #allocation7 [shape = 'u8[12288]{0}', space=vmem, size = 0x3000, scoped, tag = 'input window, operand 2, single buffered']
    #allocation8 [shape = 'u8[12288]{0}', space=vmem, size = 0x3000, scoped, tag = 'input window, operand 3, single buffered']
    #allocation9 [shape = 's32[1]{0}', space=sflag, size = 0x4, scoped, tag = 'scoped memory for tpu_custom_call.1']
    #allocation10 [shape = 'u8[12288]{0}', space=vmem, size = 0x3000, scoped, tag = 'input window, operand 4, single buffered']
    #allocation11 [shape = 'u8[12288]{0}', space=vmem, size = 0x3000, scoped, tag = 'input window, operand 5, single buffered']
    #allocation12 [shape = 's32[1]{0}', space=sflag, size = 0x4, scoped, tag = 'scoped memory for tpu_custom_call.1']
    #allocation13 [shape = 'u8[512]{0}', space=vmem, size = 0x400, scoped, tag = 'output window, operand 0, single buffered']
    %15 = vsyncpa [#allocation3], 0
    %16 = vsyncpa [#allocation6], 0
    %17 = vsyncpa [#allocation9], 0
    %18 = vsyncpa [#allocation12], 0
    %19 = vsyncpa [#allocation4], 0
    // Predicated region
    $region2: #{tpu_custom_call.1} parent=1 // pred_check
      _
    $region3: #{tpu_custom_call.1} parent=1 // pred_check_branch
      %21 = sbr.rel (0) target = $region5
    $region4: #{tpu_custom_call.1} parent=1 // pred_region
      %s23 = ssub.s32 384, 384
      %24 = vsyncadd [#allocation3], %s23
      %s25 = sshll.u32 [#allocation2], 4
      %s26 = int_to_ptr.vmem [resolvable:$true] %s25
      %31 = dma.hbm_to_vmem [thread:$0]  %s0, 384, %s26, [#allocation3], 128, 128, 8
    $region5: #{tpu_custom_call.1} parent=1 // pred_fallthru
      _
    // Predicated region
    $region6: #{tpu_custom_call.1} parent=1 // pred_check
      _
    $region7: #{tpu_custom_call.1} parent=1 // pred_check_branch
      %33 = sbr.rel (0) target = $region9
    $region8: #{tpu_custom_call.1} parent=1 // pred_region
      %s35 = ssub.s32 384, 384
      %36 = vsyncadd [#allocation6], %s35
      %s37 = sshll.u32 [#allocation5], 4
      %s38 = int_to_ptr.vmem [resolvable:$true] %s37
      %43 = dma.hbm_to_vmem [thread:$0]  %s1, 384, %s38, [#allocation6], 128, 128, 8
    $region9: #{tpu_custom_call.1} parent=1 // pred_fallthru
      _
    // Predicated region
    $region10: #{tpu_custom_call.1} parent=1 // pred_check
      _
    $region11: #{tpu_custom_call.1} parent=1 // pred_check_branch
      %45 = sbr.rel (0) target = $region13
    $region12: #{tpu_custom_call.1} parent=1 // pred_region
      %s47 = ssub.s32 384, 384
      %48 = vsyncadd [#allocation6], %s47
      %s49 = sshll.u32 [#allocation7], 4
      %s50 = int_to_ptr.vmem [resolvable:$true] %s49
      %55 = dma.hbm_to_vmem [thread:$0]  %s2, 384, %s50, [#allocation6], 128, 128, 8
    $region13: #{tpu_custom_call.1} parent=1 // pred_fallthru
      _
    // Predicated region
    $region14: #{tpu_custom_call.1} parent=1 // pred_check
      _
    $region15: #{tpu_custom_call.1} parent=1 // pred_check_branch
      %57 = sbr.rel (0) target = $region17
    $region16: #{tpu_custom_call.1} parent=1 // pred_region
      %s59 = ssub.s32 384, 384
      %60 = vsyncadd [#allocation9], %s59
      %s61 = sshll.u32 [#allocation8], 4
      %s62 = int_to_ptr.vmem [resolvable:$true] %s61
      %67 = dma.hbm_to_vmem [thread:$0]  %s3, 384, %s62, [#allocation9], 128, 128, 8
    $region17: #{tpu_custom_call.1} parent=1 // pred_fallthru
      _
    // Predicated region
    $region18: #{tpu_custom_call.1} parent=1 // pred_check
      _
    $region19: #{tpu_custom_call.1} parent=1 // pred_check_branch
      %69 = sbr.rel (0) target = $region21
    $region20: #{tpu_custom_call.1} parent=1 // pred_region
      %s71 = ssub.s32 384, 384
      %72 = vsyncadd [#allocation9], %s71
      %s73 = sshll.u32 [#allocation10], 4
      %s74 = int_to_ptr.vmem [resolvable:$true] %s73
      %79 = dma.hbm_to_vmem [thread:$0]  %s4, 384, %s74, [#allocation9], 128, 128, 8
    $region21: #{tpu_custom_call.1} parent=1 // pred_fallthru
      _
    // Predicated region
    $region22: #{tpu_custom_call.1} parent=1 // pred_check
      _
    $region23: #{tpu_custom_call.1} parent=1 // pred_check_branch
      %81 = sbr.rel (0) target = $region25
    $region24: #{tpu_custom_call.1} parent=1 // pred_region
      %s83 = ssub.s32 384, 384
      %84 = vsyncadd [#allocation12], %s83
      %s85 = sshll.u32 [#allocation11], 4
      %s86 = int_to_ptr.vmem [resolvable:$true] %s85
      %91 = dma.hbm_to_vmem [thread:$0]  %s5, 384, %s86, [#allocation12], 128, 128, 8
    $region25: #{tpu_custom_call.1} parent=1 // pred_fallthru
      _
    // Predicated region
    $region26: #{tpu_custom_call.1} parent=1 // pred_check
      _
    $region27: #{tpu_custom_call.1} parent=1 // pred_check_branch
      %93 = sbr.rel (0) target = $region29
    $region28: #{tpu_custom_call.1} parent=1 // pred_region
      _
    $region29: #{tpu_custom_call.1} parent=1 // pred_fallthru
      _
    // Predicated region
    $region30: #{tpu_custom_call.1} parent=1 // pred_check
      _
    $region31: #{tpu_custom_call.1} parent=1 // pred_check_branch
      %95 = sbr.rel (0) target = $region33
    $region32: #{tpu_custom_call.1} parent=1 // pred_region
      _
    $region33: #{tpu_custom_call.1} parent=1 // pred_fallthru
      _
    // Predicated region
    $region34: #{tpu_custom_call.1} parent=1 // pred_check
      _
    $region35: #{tpu_custom_call.1} parent=1 // pred_check_branch
      %97 = sbr.rel (0) target = $region37
    $region36: #{tpu_custom_call.1} parent=1 // pred_region
      _
    $region37: #{tpu_custom_call.1} parent=1 // pred_fallthru
      _
    // Predicated region
    $region38: #{tpu_custom_call.1} parent=1 // pred_check
      _
    $region39: #{tpu_custom_call.1} parent=1 // pred_check_branch
      %99 = sbr.rel (0) target = $region41
    $region40: #{tpu_custom_call.1} parent=1 // pred_region
      _
    $region41: #{tpu_custom_call.1} parent=1 // pred_fallthru
      _
    // Predicated region
    $region42: #{tpu_custom_call.1} parent=1 // pred_check
      _
    $region43: #{tpu_custom_call.1} parent=1 // pred_check_branch
      %101 = sbr.rel (0) target = $region45
    $region44: #{tpu_custom_call.1} parent=1 // pred_region
      %102 = dma.done [#allocation3], 384
    $region45: #{tpu_custom_call.1} parent=1 // pred_fallthru
      _
    // Predicated region
    $region46: #{tpu_custom_call.1} parent=1 // pred_check
      _
    $region47: #{tpu_custom_call.1} parent=1 // pred_check_branch
      %104 = sbr.rel (0) target = $region49
    $region48: #{tpu_custom_call.1} parent=1 // pred_region
      %105 = dma.done [#allocation6], 384
    $region49: #{tpu_custom_call.1} parent=1 // pred_fallthru
      _
    // Predicated region
    $region50: #{tpu_custom_call.1} parent=1 // pred_check
      _
    $region51: #{tpu_custom_call.1} parent=1 // pred_check_branch
      %107 = sbr.rel (0) target = $region53
    $region52: #{tpu_custom_call.1} parent=1 // pred_region
      %108 = dma.done [#allocation6], 384
    $region53: #{tpu_custom_call.1} parent=1 // pred_fallthru
      _
    // Predicated region
    $region54: #{tpu_custom_call.1} parent=1 // pred_check
      _
    $region55: #{tpu_custom_call.1} parent=1 // pred_check_branch
      %110 = sbr.rel (0) target = $region57
    $region56: #{tpu_custom_call.1} parent=1 // pred_region
      %111 = dma.done [#allocation9], 384
    $region57: #{tpu_custom_call.1} parent=1 // pred_fallthru
      _
    // Predicated region
    $region58: #{tpu_custom_call.1} parent=1 // pred_check
      _
    $region59: #{tpu_custom_call.1} parent=1 // pred_check_branch
      %113 = sbr.rel (0) target = $region61
    $region60: #{tpu_custom_call.1} parent=1 // pred_region
      %114 = dma.done [#allocation9], 384
    $region61: #{tpu_custom_call.1} parent=1 // pred_fallthru
      _
    // Predicated region
    $region62: #{tpu_custom_call.1} parent=1 // pred_check
      _
    $region63: #{tpu_custom_call.1} parent=1 // pred_check_branch
      %116 = sbr.rel (0) target = $region65
    $region64: #{tpu_custom_call.1} parent=1 // pred_region
      %117 = dma.done [#allocation12], 384
    $region65: #{tpu_custom_call.1} parent=1 // pred_fallthru
      _
    %p118 = scmp.eq.s32.totalorder 0, 0
    // Predicated region
    $region66: #{tpu_custom_call.1} parent=1 // pred_check
      %p119 = pneg %p118
    $region67: #{tpu_custom_call.1} parent=1 // pred_check_branch
      %121 = sbr.rel (%p119) target = $region69
    $region68: #{tpu_custom_call.1} parent=1 // pred_region
      %122 = vst [vmem:[#allocation13] sm:$0x1] 0.0
    $region69: #{tpu_custom_call.1} parent=1 // pred_fallthru
      _
    %v123 = vlaneseq
    %v124 = vand.u32 %v123, 127
    %s125 = smul.u32 0, 128
    %v126 = vstv %s125
    %v127 = vadd.s32 %v126, %v124
    %vm128 = vcmp.lt.s32.totalorder %v127, 128
    %v129 = vld [vmem:[%s7] sm:$0x1]
    %v130 = vld [vmem:[%s8] sm:$0x1]
    %v131 = vld [vmem:[#allocation5] sm:$0xff]
    %v132 = vld [vmem:[#allocation5 + $0x8] sm:$0xff]
    %v133 = vld [vmem:[#allocation5 + $0x10] sm:$0xf]
    %v134 = vld [vmem:[#allocation7] sm:$0xff]
    %v135 = vld [vmem:[#allocation7 + $0x8] sm:$0xff]
    %v136 = vld [vmem:[#allocation7 + $0x10] sm:$0xf]
    %v137 = vld [vmem:[#allocation8] sm:$0xff]
    %v138 = vld [vmem:[#allocation8 + $0x8] sm:$0xff]
    %v139 = vld [vmem:[#allocation8 + $0x10] sm:$0xf]
    %v140 = vld [vmem:[#allocation10] sm:$0xff]
    %v141 = vld [vmem:[#allocation10 + $0x8] sm:$0xff]
    %v142 = vld [vmem:[#allocation10 + $0x10] sm:$0xf]
    %v143 = vld [vmem:[#allocation11] sm:$0xff]
    %v144 = vld [vmem:[#allocation11 + $0x8] sm:$0xff]
    %v145 = vld [vmem:[#allocation11 + $0x10] sm:$0xf]
    %v146 = vld [vmem:[#allocation2] sm:$0xff]
    %v147 = vld [vmem:[#allocation2 + $0x8] sm:$0xff]
    %v148 = vld [vmem:[#allocation2 + $0x10] sm:$0xf]
    %v149 = vrcp.pop %v137
    %v150 = vrcp.pop %v138
    %v151 = vrcp.pop %v139
    %v152 = vrcp.pop %v140
    %v153 = vrcp.pop %v141
    %v154 = vrcp.pop %v142
    %v156 = vlaneseq
    %v157 = vshrl.u32 %v156, 7
    %v158 = vsub.s32 0, %v157
    %v159 = vrot.slane %v129, %v158
    %v161 = vsub.f32 %v159, %v131
    %v162 = vsub.f32 %v159, %v132
    %v163 = vsub.f32 %v159, %v133
    %v164 = vmul.f32 %v161, %v149
    %v165 = vmul.f32 %v162, %v150
    %v166 = vmul.f32 %v163, %v151
    %v168 = vlaneseq
    %v169 = vshrl.u32 %v168, 7
    %v170 = vsub.s32 0, %v169
    %v171 = vrot.slane %v130, %v170
    %v173 = vsub.f32 %v171, %v134
    %v174 = vsub.f32 %v171, %v135
    %v175 = vsub.f32 %v171, %v136
    %v176 = vmul.f32 %v173, %v152
    %v177 = vmul.f32 %v174, %v153
    %v178 = vmul.f32 %v175, %v154
    %v179 = vmul.f32 %v143, %v143
    %v180 = vmul.f32 %v144, %v144
    %v181 = vmul.f32 %v145, %v145
    %v182 = vsub.f32 1.0, %v179
    %v183 = vsub.f32 1.0, %v180
    %v184 = vsub.f32 1.0, %v181
    %v185 = vrsqrt.pop %v182
    %v186 = vrsqrt.pop %v183
    %v187 = vrsqrt.pop %v184
    %v188 = vmul.f32 %v164, %v164
    %v189 = vmul.f32 %v165, %v165
    %v190 = vmul.f32 %v166, %v166
    %v191 = vmul.f32 %v176, %v176
    %v192 = vmul.f32 %v177, %v177
    %v193 = vmul.f32 %v178, %v178
    %v194 = vadd.f32 %v188, %v191
    %v195 = vadd.f32 %v189, %v192
    %v196 = vadd.f32 %v190, %v193
    %v197 = vmul.f32 %v143, 2.0
    %v198 = vmul.f32 %v144, 2.0
    %v199 = vmul.f32 %v145, 2.0
    %v200 = vmul.f32 %v164, %v176
    %v201 = vmul.f32 %v165, %v177
    %v202 = vmul.f32 %v166, %v178
    %v203 = vmul.f32 %v197, %v200
    %v204 = vmul.f32 %v198, %v201
    %v205 = vmul.f32 %v199, %v202
    %v206 = vsub.f32 %v194, %v203
    %v207 = vsub.f32 %v195, %v204
    %v208 = vsub.f32 %v196, %v205
    %v209 = vmul.f32 %v206, -0.5
    %v210 = vmul.f32 %v207, -0.5
    %v211 = vmul.f32 %v208, -0.5
    %v212 = vmul.f32 %v185, %v185
    %v213 = vmul.f32 %v186, %v186
    %v214 = vmul.f32 %v187, %v187
    %v215 = vmul.f32 %v209, %v212
    %v216 = vmul.f32 %v210, %v213
    %v217 = vmul.f32 %v211, %v214
    %v218 = vmul.f32 %v215, 1.442695
    %v219 = vpow.pop %v218
    %v220 = vmul.f32 %v216, 1.442695
    %v221 = vpow.pop %v220
    %v222 = vmul.f32 %v217, 1.442695
    %v223 = vpow.pop %v222
    %v224 = vmul.f32 %v149, %v152
    %v225 = vmul.f32 %v150, %v153
    %v226 = vmul.f32 %v151, %v154
    %v227 = vmul.f32 %v224, %v185
    %v228 = vmul.f32 %v225, %v186
    %v229 = vmul.f32 %v226, %v187
    %v230 = vmul.f32 %v219, %v227
    %v231 = vmul.f32 %v221, %v228
    %v232 = vmul.f32 %v223, %v229
    %v233 = vmul.f32 %v230, 0.15915494
    %v234 = vmul.f32 %v231, 0.15915494
    %v235 = vmul.f32 %v232, 0.15915494
    %v236 = vmul.f32 %v233, %v146
    %v237 = vmul.f32 %v234, %v147
    %v238 = vmul.f32 %v235, %v148
    %v239 = vadd.f32 %v236, %v237
    %vm240 = vcmask 1043456
    %v241 = vsel %vm240, %v238, 0.0
    %v242 = vadd.f32 %v239, %v241
    %v243 = vrot.slane %v242, 4
    %v244 = vadd.f32 %v242, %v243
    %v245 = vrot.slane %v244, 2
    %v246 = vadd.f32 %v244, %v245
    %v247 = vrot.slane %v246, 1
    %v248 = vadd.f32 %v246, %v247
    %v249 = vadd.f32 %v248, 1e-06
    %v250 = vlog2.pop %v249
    %v251 = vmul.f32 %v250, 0.6931472
    %v252 = vsub.f32 0.0, %v251
    %v253 = vld [vmem:[%s9] sm:$0x7]
    %v254 = vsub.f32 1.0, %v253
    %v255 = vld [vmem:[%s6] sm:$0x7]
    %vm256 = vcmask 1042432
    %v257 = vsel %vm256, %v255, -inf
    %v258 = vrot.slane %v257, 4
    %v259 = vmax.f32 %v257, %v258
    %v260 = vrot.slane %v259, 2
    %v261 = vmax.f32 %v259, %v260
    %v262 = vrot.slane %v261, 1
    %v263 = vmax.f32 %v261, %v262
    %v264 = vsub.f32 %v255, %v263
    %v265 = vmul.f32 %v264, 1.442695
    %v266 = vpow.pop %v265
    %v267 = vsel %vm256, %v266, 0.0
    %v268 = vrot.slane %v267, 4
    %v269 = vadd.f32 %v267, %v268
    %v270 = vrot.slane %v269, 2
    %v271 = vadd.f32 %v269, %v270
    %v272 = vrot.slane %v271, 1
    %v273 = vadd.f32 %v271, %v272
    %v274 = vlog2.pop %v273
    %v275 = vmul.f32 %v274, 0.6931472
    %v276 = vsub.f32 %v264, %v275
    %v277 = vmul.f32 %v253, %v276
    %v278 = vsel %vm256, %v277, 0.0
    %v279 = vrot.slane %v278, 4
    %v280 = vadd.f32 %v278, %v279
    %v281 = vrot.slane %v280, 2
    %v282 = vadd.f32 %v280, %v281
    %v283 = vrot.slane %v282, 1
    %v284 = vadd.f32 %v282, %v283
    %v285 = vsub.f32 0.0, %v284
    %v286 = vmul.f32 %v252, %v254
    %v287 = vadd.f32 %v286, %v285
    %v288 = vld [vmem:[#allocation13] sm:$0x1]
    %v289 = vsel %vm128, %v287, 0.0
    %v292 = vunpack.c.l.s4 1966171168
    %v293 = vunpack.c.0.s8 %v292
    %v294 = vlaneseq
    %v295 = vshrl.u32 %v294, 7
    %v296 = vsub.s32 %v293, %v295
    %v297 = vrot.slane %v289, %v296
    %v299 = vunpack.c.l.s4 1966171168
    %v300 = vunpack.c.0.s8 %v299
    %v301 = vlaneseq
    %v302 = vshrl.u32 %v301, 7
    %v303 = vsub.s32 %v300, %v302
    %v304 = vrot.slane %v297, %v303
    %v305 = vcombine.high %v304, %v304
    %v307 = vadd.f32 %v288, %v305
    %308 = vst [vmem:[#allocation13] sm:$0x1] %v307
    // Predicated region
    $region70: #{tpu_custom_call.1} parent=1 // pred_check
      _
    $region71: #{tpu_custom_call.1} parent=1 // pred_check_branch
      %310 = sbr.rel (0) target = $region73
    $region72: #{tpu_custom_call.1} parent=1 // pred_region
      %s312 = ssub.s32 16, 16
      %313 = vsyncadd [#allocation4], %s312
      %s315 = sshll.u32 [#allocation13], 4
      %s316 = int_to_ptr.vmem [resolvable:$true] %s315
      %318 = dma.vmem_to_hbm [thread:$0]  %s316, 16, %s10, [#allocation4]
    $region73: #{tpu_custom_call.1} parent=1 // pred_fallthru
      _
    // Predicated region
    $region74: #{tpu_custom_call.1} parent=1 // pred_check
      _
    $region75: #{tpu_custom_call.1} parent=1 // pred_check_branch
      %320 = sbr.rel (0) target = $region77
    $region76: #{tpu_custom_call.1} parent=1 // pred_region
      %321 = dma.done [#allocation4], 16
    $region77: #{tpu_custom_call.1} parent=1 // pred_fallthru
      _
    %322 = vsyncpa [#allocation3], 1
    %323 = vsyncpa [#allocation6], 1
    %324 = vsyncpa [#allocation9], 1
    %325 = vsyncpa [#allocation12], 1
    %326 = vsyncpa [#allocation4], 1

</llo_original>
